<compile_context>
chip_gen: v7x
topology: tpu7x:2x2x1
jax: 0.10.0
libtpu: 0.0.40
codegen_flags: <defaults>
</compile_context>

<pallas_src>
import jax
import jax.numpy as jnp
from jax.experimental import pallas as pl
from jax.experimental.pallas import tpu as pltpu


def _round_up(x: int, m: int) -> int:
    return ((x + m - 1) // m) * m


def _choose_tile(length: int, cap: int, min_tiles: int):
    """Pick a lane-dense tile for the last axis.

    Returns (tile, num_tiles).  `tile` is either the full extent `length`
    (allowed by the (8,128) full-dim exception) or a multiple of 128, chosen
    so the last (possibly partial, write-masked) tile wastes < 128 columns.
    """
    cap = max(128, (cap // 128) * 128)
    if length <= 128 or (length <= cap and min_tiles <= 1):
        return length, 1
    k = max(pl.cdiv(length, cap), min_tiles)
    tile = min(_round_up(pl.cdiv(length, k), 128), cap)
    return tile, pl.cdiv(length, tile)


# --------------------------------------------------------------------------
# Kernels
# --------------------------------------------------------------------------

def _mel_kernel_native(fb_ref, x_ref, o_ref):
    # fb_ref: (M, F)        pre-ReLU'd filter bank, same block every step
    # x_ref : (1, F, TILE)  native-layout spectrogram tile
    # o_ref : (1, M, TILE)
    mel = jnp.dot(fb_ref[...], x_ref[0],
                  preferred_element_type=jnp.float32)        # MXU
    mel = jnp.log(mel + 1e-5)                                 # EUP
    o_ref[0] = ((mel + 4.5) * 0.2).astype(o_ref.dtype)        # fused affine


def _mel_kernel_folded(fb_ref, x_ref, o_ref):
    # fb_ref: (M, Fp); x_ref: (Fp, TILE); o_ref: (M, TILE)
    mel = jnp.dot(fb_ref[...], x_ref[...],
                  preferred_element_type=jnp.float32)
    mel = jnp.log(mel + 1e-5)
    o_ref[...] = ((mel + 4.5) * 0.2).astype(o_ref.dtype)


# --------------------------------------------------------------------------
# Wrappers
# --------------------------------------------------------------------------

def _mel_forward_native(fb, x, *, tile_t, vmem_limit_bytes):
    """fb: (M, F) already ReLU'd; x: (B, F, T) -> (B, M, T).  No layout passes."""
    M, F = fb.shape
    B, _, T = x.shape
    num_t = pl.cdiv(T, tile_t)

    return pl.pallas_call(
        _mel_kernel_native,
        out_shape=jax.ShapeDtypeStruct((B, M, T), jnp.float32),
        grid_spec=pltpu.PrefetchScalarGridSpec(
            num_scalar_prefetch=0,
            grid=(B, num_t),
            in_specs=[
                # small filter bank: whole array, resident across the grid
                pl.BlockSpec((M, F), lambda b, j: (0, 0)),
                # one (F, TILE) slice of batch b; F left at full extent
                pl.BlockSpec((1, F, tile_t), lambda b, j: (b, 0, j)),
            ],
            out_specs=pl.BlockSpec((1, M, tile_t), lambda b, j: (b, 0, j)),
        ),
        compiler_params=pltpu.CompilerParams(
            dimension_semantics=("parallel", "parallel"),
            vmem_limit_bytes=vmem_limit_bytes,
        ),
    )(fb, x)


def _mel_forward_folded(fb, x, *, vmem_limit_bytes):
    """Fallback for tiny T (< 128): fold (B,F,T) -> (F, B*T) so the output's
    last dim stays lane dense.  Only used for small problems, so the extra
    layout pass is cheap."""
    M, F = fb.shape
    B, _, T = x.shape
    N = B * T

    x2d = jnp.transpose(x, (1, 0, 2)).reshape(F, N)

    F_pad = _round_up(F, 8)
    if F_pad != F:
        fb = jnp.pad(fb, ((0, 0), (0, F_pad - F)))
        x2d = jnp.pad(x2d, ((0, F_pad - F), (0, 0)))

    N_pad = _round_up(N, 128)                    # pad to one lane width only
    if N_pad != N:
        x2d = jnp.pad(x2d, ((0, 0), (0, N_pad - N)))   # zeros -> log(1e-5)

    budget = int(vmem_limit_bytes * 0.75) - 2 * M * F_pad * 4
    cap = min(max(128, budget // (8 * (F_pad + M))), 4096)
    tile_n, num_tiles = _choose_tile(N_pad, cap, 1)

    out2d = pl.pallas_call(
        _mel_kernel_folded,
        out_shape=jax.ShapeDtypeStruct((M, N_pad), jnp.float32),
        grid_spec=pltpu.PrefetchScalarGridSpec(
            num_scalar_prefetch=0,
            grid=(num_tiles,),
            in_specs=[
                pl.BlockSpec((M, F_pad), lambda i: (0, 0)),
                pl.BlockSpec((F_pad, tile_n), lambda i: (0, i)),
            ],
            out_specs=pl.BlockSpec((M, tile_n), lambda i: (0, i)),
        ),
        compiler_params=pltpu.CompilerParams(
            dimension_semantics=("parallel",),
            vmem_limit_bytes=vmem_limit_bytes,
        ),
    )(fb, x2d)

    out2d = out2d[:, :N]
    return jnp.transpose(out2d.reshape(M, B, T), (1, 0, 2))


def mel_forward(filter_banks, x, *, tile_t=None, vmem_limit_bytes=32 * 1024 * 1024):
    """filter_banks: (M, F) float32; x: (B, F, T) float32 -> (B, M, T) float32."""
    M, F = filter_banks.shape
    B, F2, T = x.shape
    assert F == F2, "freq-bin mismatch between filter_banks and x"

    # ReLU hoisted out of the steady-state loop (M*F is ~256 KiB at most).
    fb = jnp.maximum(filter_banks.astype(jnp.float32), 0.0)
    x = x.astype(jnp.float32)

    if T < 128:
        return _mel_forward_folded(fb, x, vmem_limit_bytes=vmem_limit_bytes)

    # ---- native-layout path ----
    if tile_t is None:
        # Double-buffered x tile (F*tile) + out tile (M*tile) + resident fb
        # must fit well inside the scoped-VMEM budget; hard cap keeps v7x
        # (64 MiB physical) safe even if a bigger budget is passed.
        budget = int(vmem_limit_bytes * 0.75) - 2 * M * F * 4
        cap = min(max(128, budget // (8 * (F + M))), 4096)
    else:
        cap = max(128, _round_up(tile_t, 128))

    # Guarantee >= 2 grid steps when B == 1 so v7x's second TC gets work.
    min_t_tiles = 1 if B >= 2 else 2
    tile, _ = _choose_tile(T, cap, min_t_tiles)

    return _mel_forward_native(fb, x, tile_t=tile,
                               vmem_limit_bytes=vmem_limit_bytes)


def _reference(filter_banks, x):
    fb = jnp.maximum(filter_banks, 0.0)
    mel = jnp.einsum("mf,bft->bmt", fb, x)
    mel = jnp.log(mel + 1e-5)
    return (mel + 4.5) / 5.0


if __name__ == "__main__":
    key = jax.random.PRNGKey(0)

    # ---- test 1: tiny T (< 128) -> folded fallback path ----
    #   n_mels = 32, n_fft = 128 -> n_freq = 65, batch = 2, T = 16
    B, M, F, T = 2, 32, 65, 16
    k_fb, k_x = jax.random.split(key)
    base = jax.random.uniform(k_fb, (M, F), dtype=jnp.float32)
    scale = 0.3 * jax.random.uniform(jax.random.fold_in(k_fb, 1), (M, F),
                                     dtype=jnp.float32) + 0.69
    filter_banks = (base - 0.25) * scale      # includes negatives so ReLU matters
    x = jax.random.uniform(k_x, (B, F, T), dtype=jnp.float32) * 2.0

    out = jax.block_until_ready(mel_forward(filter_banks, x))
    ref = _reference(filter_banks, x)
    assert out.shape == (B, M, T)
    assert jnp.allclose(out, ref, atol=1e-5, rtol=1e-5), "mismatch (folded path)"

    # ---- test 2: native (B, F, T) path, full-extent T tile, batch-parallel ----
    B2, M2, F2, T2 = 3, 128, 257, 200
    k_fb2, k_x2 = jax.random.split(jax.random.fold_in(key, 7))
    fb2 = jax.random.uniform(k_fb2, (M2, F2), dtype=jnp.float32) - 0.25
    x2 = jax.random.uniform(k_x2, (B2, F2, T2), dtype=jnp.float32) * 2.0

    out2 = jax.block_until_ready(mel_forward(fb2, x2))
    ref2 = _reference(fb2, x2)
    assert out2.shape == (B2, M2, T2)
    assert jnp.allclose(out2, ref2, atol=2e-4, rtol=2e-4), "mismatch (native path)"

    # ---- test 3: native path, multi-tile T with a partial (masked) last tile ----
    B3, M3, F3, T3 = 1, 64, 129, 300
    k_fb3, k_x3 = jax.random.split(jax.random.fold_in(key, 13))
    fb3 = jax.random.uniform(k_fb3, (M3, F3), dtype=jnp.float32) - 0.25
    x3 = jax.random.uniform(k_x3, (B3, F3, T3), dtype=jnp.float32) * 2.0

    out3 = jax.block_until_ready(mel_forward(fb3, x3, tile_t=128))
    ref3 = _reference(fb3, x3)
    assert out3.shape == (B3, M3, T3)
    assert jnp.allclose(out3, ref3, atol=2e-4, rtol=2e-4), "mismatch (tiled native)"

    print("KERNEL_OK")
</pallas_src>

<mosaic_0001>
module attributes {stable_mosaic.version = 11 : i64} {
  func.func @_mel_kernel_folded(%arg0: i32, %arg1: memref<32x72xf32, #tpu.memory_space<vmem>>, %arg2: memref<72x128xf32, #tpu.memory_space<vmem>>, %arg3: memref<32x128xf32, #tpu.memory_space<vmem>>) attributes {dimension_semantics = [#tpu.dimension_semantics<parallel>], iteration_bounds = array<i64: 1>, scalar_prefetch = 0 : i64, scratch_operands = 0 : i64, tpu.core_type = #tpu.core_type<tc>, window_params = [{pipeline_mode = #tpu.pipeline_mode<synchronous>, transform_indices = @transform_0, window_bounds = array<i64: 32, 72>}, {transform_indices = @transform_1, window_bounds = array<i64: 72, 128>}, {transform_indices = @transform_2, window_bounds = array<i64: 32, 128>}]} {
    %c0 = arith.constant 0 : index
    %c0_0 = arith.constant 0 : index
    %0 = vector.load %arg1[%c0, %c0_0] : memref<32x72xf32, #tpu.memory_space<vmem>>, vector<32x72xf32>
    %c0_1 = arith.constant 0 : index
    %c0_2 = arith.constant 0 : index
    %1 = vector.load %arg2[%c0_1, %c0_2] : memref<72x128xf32, #tpu.memory_space<vmem>>, vector<72x128xf32>
    %cst = arith.constant dense<0.000000e+00> : vector<32x128xf32>
    %2 = tpu.matmul %0, %1, %cst {dimension_numbers = #tpu.dot_dimension_numbers<[1], [0], [0], [1], [0, 0, 1, 1], [], []>} : vector<32x72xf32>, vector<72x128xf32>, vector<32x128xf32> -> vector<32x128xf32>
    %cst_3 = arith.constant 9.99999974E-6 : f32
    %3 = vector.broadcast %cst_3 : f32 to vector<32x128xf32>
    %4 = arith.addf %2, %3 : vector<32x128xf32>
    %5 = math.log %4 : vector<32x128xf32>
    %cst_4 = arith.constant 4.500000e+00 : f32
    %6 = vector.broadcast %cst_4 : f32 to vector<32x128xf32>
    %7 = arith.addf %5, %6 : vector<32x128xf32>
    %cst_5 = arith.constant 2.000000e-01 : f32
    %8 = vector.broadcast %cst_5 : f32 to vector<32x128xf32>
    %9 = arith.mulf %7, %8 : vector<32x128xf32>
    %c0_6 = arith.constant 0 : index
    %c0_7 = arith.constant 0 : index
    %10 = vector.load %arg3[%c0_6, %c0_7] : memref<32x128xf32, #tpu.memory_space<vmem>>, vector<32x128xf32>
    tpu.vector_store %arg3[%c0_6, %c0_7], %9 {strides = array<i32>} : memref<32x128xf32, #tpu.memory_space<vmem>>, vector<32x128xf32>,
    return
  }
  func.func @transform_0(%arg0: i32) -> (i32, i32) {
    %c0_i32 = arith.constant 0 : i32
    %c0_i32_0 = arith.constant 0 : i32
    %c0_i32_1 = arith.constant 0 : i32
    return %c0_i32, %c0_i32_0 : i32, i32
  }
  func.func @transform_1(%arg0: i32) -> (i32, i32) {
    %c0_i32 = arith.constant 0 : i32
    %c0_i32_0 = arith.constant 0 : i32
    return %c0_i32, %arg0 : i32, i32
  }
  func.func @transform_2(%arg0: i32) -> (i32, i32) {
    %c0_i32 = arith.constant 0 : i32
    %c0_i32_0 = arith.constant 0 : i32
    return %c0_i32, %arg0 : i32, i32
  }
}

</mosaic_0001>

<llo_original>
// kernel: tpu_custom_call.1
$region0: #{tpu_custom_call.1}
  #allocation0 [shape = 'u32[]', space=smem, size = 0x4, offset = 0x4, fixed_abs, tag = 'smem constant byte address 0x4 - core index']
  #allocation1 [shape = 'u32[144,128]{1,0:T(1,128)}', space=vmem, size = 0x12000, scoped, tag = 'internal scratch']
  %s0 = inlined_call_operand.hbm [shape: f32[32,72], index: 0, kind: input, shape index: {}]
  %s1 = inlined_call_operand.hbm [shape: f32[72,128], index: 1, kind: input, shape index: {}]
  %s2 = inlined_call_operand.hbm [shape: f32[32,128], index: 2, kind: output, shape index: {}]
  %s3 = sld [smem:[#allocation0]]
  $region26: #{tpu_custom_call.1} parent=0
    _
  %s5 = ssub.s32 1, %s3
  %s6 = scalar_select 0, %s5, %s3
  $region1: #{tpu_custom_call.1} parent=0
    #allocation2 [shape = 'u8[16384]{0}', space=vmem, size = 0x4000, scoped, tag = 'input window, operand 0, single buffered']
    #allocation3 [shape = 's32[1]{0}', space=sflag, size = 0x4, scoped, tag = 'scoped memory for tpu_custom_call.1']
    #allocation4 [shape = 's32[1]{0}', space=sflag, size = 0x4, scoped, tag = 'scoped memory for tpu_custom_call.1']
    #allocation5 [shape = 'u8[36864]{0}', space=vmem, size = 0x9000, scoped, tag = 'input window, operand 1, single buffered']
    #allocation6 [shape = 's32[1]{0}', space=sflag, size = 0x4, scoped, tag = 'scoped memory for tpu_custom_call.1']
    #allocation7 [shape = 'u8[16384]{0}', space=vmem, size = 0x4000, scoped, tag = 'output window, operand 0, single buffered']
    %7 = vsyncpa [#allocation3], 0
    %8 = vsyncpa [#allocation6], 0
    %9 = vsyncpa [#allocation4], 0
    // Predicated region
    $region2: #{tpu_custom_call.1} parent=1 // pred_check
      _
    $region3: #{tpu_custom_call.1} parent=1 // pred_check_branch
      %11 = sbr.rel (0) target = $region5
    $region4: #{tpu_custom_call.1} parent=1 // pred_region
      %s13 = ssub.s32 512, 512
      %14 = vsyncadd [#allocation3], %s13
      %s15 = sshll.u32 [#allocation2], 4
      %s16 = int_to_ptr.vmem [resolvable:$true] %s15
      %21 = dma.hbm_to_vmem [thread:$0]  %s0, 512, %s16, [#allocation3], 128, 128, 8
    $region5: #{tpu_custom_call.1} parent=1 // pred_fallthru
      _
    // Predicated region
    $region6: #{tpu_custom_call.1} parent=1 // pred_check
      _
    $region7: #{tpu_custom_call.1} parent=1 // pred_check_branch
      %23 = sbr.rel (0) target = $region9
    $region8: #{tpu_custom_call.1} parent=1 // pred_region
      %s25 = ssub.s32 1152, 1152
      %26 = vsyncadd [#allocation6], %s25
      %s27 = sshll.u32 [#allocation5], 4
      %s28 = int_to_ptr.vmem [resolvable:$true] %s27
      %33 = dma.hbm_to_vmem [thread:$0]  %s1, 1152, %s28, [#allocation6], 128, 128, 8
    $region9: #{tpu_custom_call.1} parent=1 // pred_fallthru
      _
    // Predicated region
    $region10: #{tpu_custom_call.1} parent=1 // pred_check
      _
    $region11: #{tpu_custom_call.1} parent=1 // pred_check_branch
      %35 = sbr.rel (0) target = $region13
    $region12: #{tpu_custom_call.1} parent=1 // pred_region
      %36 = dma.done [#allocation3], 512
    $region13: #{tpu_custom_call.1} parent=1 // pred_fallthru
      _
    // Predicated region
    $region14: #{tpu_custom_call.1} parent=1 // pred_check
      _
    $region15: #{tpu_custom_call.1} parent=1 // pred_check_branch
      %38 = sbr.rel (0) target = $region17
    $region16: #{tpu_custom_call.1} parent=1 // pred_region
      %39 = dma.done [#allocation6], 1152
    $region17: #{tpu_custom_call.1} parent=1 // pred_fallthru
      _
    %v40 = vld [vmem:[#allocation2] sm:$0xff]
    %v41 = vld [vmem:[#allocation2 + $0x8] sm:$0xff]
    %v42 = vld [vmem:[#allocation2 + $0x10] sm:$0xff]
    %v43 = vld [vmem:[#allocation2 + $0x18] sm:$0xff]
    %v44 = vld [vmem:[#allocation5] sm:$0xff]
    %v45 = vld [vmem:[#allocation5 + $0x8] sm:$0xff]
    %v46 = vld [vmem:[#allocation5 + $0x10] sm:$0xff]
    %v47 = vld [vmem:[#allocation5 + $0x18] sm:$0xff]
    %v48 = vld [vmem:[#allocation5 + $0x20] sm:$0xff]
    %v49 = vld [vmem:[#allocation5 + $0x28] sm:$0xff]
    %v50 = vld [vmem:[#allocation5 + $0x30] sm:$0xff]
    %v51 = vld [vmem:[#allocation5 + $0x38] sm:$0xff]
    %v52 = vld [vmem:[#allocation5 + $0x40] sm:$0xff]
    %vm53 = vcmask 588800
    %v55 = vsel %vm53, %v40, 0
    %v58 = vsel %vm53, %v41, 0
    %v61 = vsel %vm53, %v42, 0
    %v64 = vsel %vm53, %v43, 0
    %66 = vmatprep.subr.mxu0 0.0
    %67 = vmatpush1.msra.mxu0 %v44
    %68 = vmatprep.subr.mxu0 0.0
    %69 = vmatpush1.msra.mxu0 %v45
    %70 = vmatprep.subr.mxu0 0.0
    %71 = vmatpush1.msra.mxu0 %v46
    %72 = vmatprep.subr.mxu0 0.0
    %73 = vmatpush1.msra.mxu0 %v47
    %74 = vmatprep.subr.mxu0 0.0
    %75 = vmatpush1.msra.mxu0 %v48
    %76 = vmatprep.subr.mxu0 0.0
    %77 = vmatpush1.msra.mxu0 %v49
    %78 = vmatprep.subr.mxu0 0.0
    %79 = vmatpush1.msra.mxu0 %v50
    %80 = vmatprep.subr.mxu0 0.0
    %81 = vmatpush1.msra.mxu0 %v51
    %82 = vmatprep.subr.mxu0 0.0
    %83 = vmatpush1.msra.mxu0 %v52
    %84 = vmatprep.subr.mxu0 0.0
    %85 = vmatpush1.msra.mxu0 0.0
    %86 = vmatprep.subr.mxu0 0.0
    %87 = vmatpush1.msra.mxu0 0.0
    %88 = vmatprep.subr.mxu0 0.0
    %89 = vmatpush1.msra.mxu0 0.0
    %90 = vmatprep.subr.mxu0 0.0
    %91 = vmatpush1.msra.mxu0 0.0
    %92 = vmatprep.subr.mxu0 0.0
    %93 = vmatpush1.msra.mxu0 0.0
    %94 = vmatprep.subr.mxu0 0.0
    %95 = vmatpush1.msra.mxu0 0.0
    %96 = vmatprep.subr.mxu0 0.0
    %97 = vmatpush1.msra.mxu0 0.0
    %98 = vmatprep.subr.mxu0 0.0
    %99 = vmatpush1.msra.mxu0 0.0
    %100 = vmatprep.subr.mxu0 0.0
    %101 = vmatpush1.msra.mxu0 0.0
    %102 = vmatprep.subr.mxu0 0.0
    %103 = vmatpush1.msra.mxu0 0.0
    %104 = vmatprep.subr.mxu0 0.0
    %105 = vmatpush1.msra.mxu0 0.0
    %106 = vmatprep.subr.mxu0 0.0
    %107 = vmatpush1.msra.mxu0 0.0
    %108 = vmatprep.subr.mxu0 0.0
    %109 = vmatpush1.msra.mxu0 0.0
    %110 = vmatprep.subr.mxu0 0.0
    %111 = vmatpush1.msra.mxu0 0.0
    %112 = vmatprep.subr.mxu0 0.0
    %113 = vmatpush1.msra.mxu0 0.0
    %114 = vmatprep.subr.mxu0 0.0
    %115 = vmatpush1.msra.mxu0 0.0
    %116 = vmatprep.subr.mxu0 0.0
    %117 = vmatpush1.msra.mxu0 0.0
    %118 = vmatprep.subr.mxu0 0.0
    %119 = vmatpush1.msra.mxu0 0.0
    %120 = vmatprep.subr.mxu0 0.0
    %121 = vmatpush1.msra.mxu0 0.0
    %122 = vmatprep.subr.mxu0 0.0
    %123 = vmatpush1.msra.mxu0 0.0
    %124 = vmatprep.subr.mxu0 0.0
    %125 = vmatpush1.msra.mxu0 0.0
    %126 = vmatprep.subr.mxu0 0.0
    %127 = vmatpush1.msra.mxu0 0.0
    %128 = vmatprep.subr.mxu0 0.0
    %129 = vmatpush1.msra.mxu0 0.0
    %130 = vmatprep.mubr.f32.mxu0 0.0
    %131 = vmatmul.mubr.f32.gmra.mrb[0].mxu0 %v55
    %v132 = vpop.f32.mrb[0].mxu0
    %v133 = vadd.f32 1e-05, %v132
    %v134 = vpop.f32.mrb[0].mxu0
    %135 = vmatprep.mubr.f32.mxu0 0.0
    %136 = vmatmul.mubr.f32.gmra.mrb[0].mxu0 %v58
    %v137 = vpop.f32.mrb[0].mxu0
    %v138 = vadd.f32 1e-05, %v137
    %v139 = vpop.f32.mrb[0].mxu0
    %140 = vmatprep.mubr.f32.mxu0 0.0
    %141 = vmatmul.mubr.f32.gmra.mrb[0].mxu0 %v61
    %v142 = vpop.f32.mrb[0].mxu0
    %v143 = vadd.f32 1e-05, %v142
    %v144 = vpop.f32.mrb[0].mxu0
    %145 = vmatprep.mubr.f32.mxu0 0.0
    %146 = vmatmul.mubr.f32.gmra.mrb[0].mxu0 %v64
    %v147 = vpop.f32.mrb[0].mxu0
    %v148 = vadd.f32 1e-05, %v147
    %v149 = vpop.f32.mrb[0].mxu0
    %150 = vdwg.mxu0
    %v151 = vlog2.pop %v133
    %v152 = vmul.f32 %v151, 0.6931472
    %v153 = vlog2.pop %v138
    %v154 = vmul.f32 %v153, 0.6931472
    %v155 = vlog2.pop %v143
    %v156 = vmul.f32 %v155, 0.6931472
    %v157 = vlog2.pop %v148
    %v158 = vmul.f32 %v157, 0.6931472
    %v159 = vadd.f32 %v152, 4.5
    %v160 = vadd.f32 %v154, 4.5
    %v161 = vadd.f32 %v156, 4.5
    %v162 = vadd.f32 %v158, 4.5
    %v163 = vmul.f32 %v159, 0.2
    %v164 = vmul.f32 %v160, 0.2
    %v165 = vmul.f32 %v161, 0.2
    %v166 = vmul.f32 %v162, 0.2
    %167 = vst [vmem:[#allocation7] sm:$0xff] %v163
    %168 = vst [vmem:[#allocation7 + $0x8] sm:$0xff] %v164
    %169 = vst [vmem:[#allocation7 + $0x10] sm:$0xff] %v165
    %170 = vst [vmem:[#allocation7 + $0x18] sm:$0xff] %v166
    // Predicated region
    $region18: #{tpu_custom_call.1} parent=1 // pred_check
      _
    $region19: #{tpu_custom_call.1} parent=1 // pred_check_branch
      %172 = sbr.rel (0) target = $region21
    $region20: #{tpu_custom_call.1} parent=1 // pred_region
      %s174 = ssub.s32 512, 512
      %175 = vsyncadd [#allocation4], %s174
      %s176 = sshll.u32 [#allocation7], 4
      %s177 = int_to_ptr.vmem [resolvable:$true] %s176
      %182 = dma.vmem_to_hbm [thread:$0]  %s177, 512, %s2, [#allocation4], 128, 128, 8
    $region21: #{tpu_custom_call.1} parent=1 // pred_fallthru
      _
    // Predicated region
    $region22: #{tpu_custom_call.1} parent=1 // pred_check
      _
    $region23: #{tpu_custom_call.1} parent=1 // pred_check_branch
      %184 = sbr.rel (0) target = $region25
    $region24: #{tpu_custom_call.1} parent=1 // pred_region
      %185 = dma.done [#allocation4], 512
    $region25: #{tpu_custom_call.1} parent=1 // pred_fallthru
      _
    %186 = vsyncpa [#allocation3], 1
    %187 = vsyncpa [#allocation6], 1
    %188 = vsyncpa [#allocation4], 1

</llo_original>
